<compile_context>
chip_gen: v7x
topology: tpu7x:2x2x1
jax: 0.10.0
libtpu: 0.0.40
codegen_flags: <defaults>
</compile_context>

<pallas_src>
import math

import jax
import jax.numpy as jnp
from jax.experimental import pallas as pl
from jax.experimental.pallas import tpu as pltpu


def attn_mixer_kernel(x_ref, wqkv_ref, bqkv_ref, o_ref):
    bblk, t, c = x_ref.shape
    x = x_ref[...]                                   # (BBLK, T, C), native dtype
    x2d = x.reshape(bblk * t, c)                     # pack M dim for the MXU

    # Fused QKV projection: one wide matmul, f32 accumulation.
    qkv = jnp.dot(x2d, wqkv_ref[...], preferred_element_type=jnp.float32)
    qkv = qkv + bqkv_ref[...]                        # (BBLK*T, 3C), f32

    compute_dtype = x.dtype                          # bf16 stays bf16 on the MXU
    q = qkv[:, 0 * c:1 * c].astype(compute_dtype).reshape(bblk, t, c)
    k = qkv[:, 1 * c:2 * c].astype(compute_dtype).reshape(bblk, t, c)
    v = qkv[:, 2 * c:3 * c].astype(compute_dtype).reshape(bblk, t, c)

    # scores = (q / sqrt(T)) @ k^T ; the 1/sqrt(T) scale is already folded into
    # the query weights/bias in the wrapper. Batched contraction over the last
    # dims avoids an explicit transpose of k.
    scores = jnp.einsum("btc,bsc->bts", q, k,
                        preferred_element_type=jnp.float32)   # (BBLK, T, T) f32
    attn = jax.nn.sigmoid(scores)                             # f32 for accuracy

    out = jnp.einsum("bts,bsc->btc", attn.astype(compute_dtype), v,
                     preferred_element_type=jnp.float32)      # (BBLK, T, C)
    o_ref[...] = out.astype(o_ref.dtype)


def _pick_bblk(batch, time, channels, itemsize):
    """Largest divisor of `batch` that keeps the x block <= ~2 MiB, preferring
    blocks with >= 256 projection rows (MXU M packing)."""
    max_block_bytes = 2 * 1024 * 1024
    best = 1
    for d in range(1, batch + 1):
        if batch % d != 0:
            continue
        if d * time * channels * itemsize > max_block_bytes:
            break
        best = d
        if d * time >= 256:
            break
    return best


def attn_mixer(x, wq, bq, wk, bk, wv, bv):
    """x: (B, T, C); w*: (C, C) stored as (in, out); b*: (1, C)."""
    B, T, C = x.shape
    inv_sqrt_time = 1.0 / math.sqrt(T)   # matches np.sqrt(x.shape[1]) in torch

    # Fold the score scale into the query projection and fuse Q/K/V.
    wqkv = jnp.concatenate([wq * inv_sqrt_time, wk, wv], axis=1)   # (C, 3C)
    bqkv = jnp.concatenate([bq * inv_sqrt_time, bk, bv], axis=1)   # (1, 3C)

    bblk = _pick_bblk(B, T, C, x.dtype.itemsize)
    grid = (B // bblk,)

    return pl.pallas_call(
        attn_mixer_kernel,
        out_shape=jax.ShapeDtypeStruct((B, T, C), x.dtype),
        grid_spec=pltpu.PrefetchScalarGridSpec(
            num_scalar_prefetch=0,
            grid=grid,
            in_specs=[
                pl.BlockSpec((bblk, T, C), lambda i: (i, 0, 0)),   # x
                pl.BlockSpec((C, 3 * C), lambda i: (0, 0)),        # fused Wqkv
                pl.BlockSpec((1, 3 * C), lambda i: (0, 0)),        # fused bias
            ],
            out_specs=pl.BlockSpec((bblk, T, C), lambda i: (i, 0, 0)),
        ),
        compiler_params=pltpu.CompilerParams(
            dimension_semantics=("parallel",)),
    )(x, wqkv, bqkv)


def reference(x, wq, bq, wk, bk, wv, bv):
    q = x @ wq + bq
    k = x @ wk + bk
    v = x @ wv + bv
    attn = jnp.einsum("btc,bsc->bts", q, k) / jnp.sqrt(jnp.float32(x.shape[1]))
    attn = jax.nn.sigmoid(attn)
    return attn @ v


if __name__ == "__main__":
    B, T, C = 2, 8, 32
    key = jax.random.PRNGKey(0)
    kx, kq, kbq, kk, kbk, kv, kbv = jax.random.split(key, 7)

    x = jax.random.normal(kx, (B, T, C), dtype=jnp.float32)

    # Deterministic init mimicking nn.Linear's uniform(-1/sqrt(C), 1/sqrt(C)).
    bound = 1.0 / math.sqrt(C)
    wq = jax.random.uniform(kq, (C, C), jnp.float32, -bound, bound)
    bq = jax.random.uniform(kbq, (1, C), jnp.float32, -bound, bound)
    wk = jax.random.uniform(kk, (C, C), jnp.float32, -bound, bound)
    bk = jax.random.uniform(kbk, (1, C), jnp.float32, -bound, bound)
    wv = jax.random.uniform(kv, (C, C), jnp.float32, -bound, bound)
    bv = jax.random.uniform(kbv, (1, C), jnp.float32, -bound, bound)

    out = attn_mixer(x, wq, bq, wk, bk, wv, bv)
    jax.block_until_ready(out)

    ref = reference(x, wq, bq, wk, bk, wv, bv)
    assert out.shape == (B, T, C)
    assert jnp.allclose(out, ref, atol=1e-4, rtol=1e-4)

    print("KERNEL_OK")
</pallas_src>

<mosaic_0001>
module attributes {stable_mosaic.version = 11 : i64} {
  func.func @attn_mixer_kernel(%arg0: i32, %arg1: memref<2x8x32xf32, #tpu.memory_space<vmem>>, %arg2: memref<32x96xf32, #tpu.memory_space<vmem>>, %arg3: memref<1x96xf32, #tpu.memory_space<vmem>>, %arg4: memref<2x8x32xf32, #tpu.memory_space<vmem>>) attributes {dimension_semantics = [#tpu.dimension_semantics<parallel>], iteration_bounds = array<i64: 1>, scalar_prefetch = 0 : i64, scratch_operands = 0 : i64, tpu.core_type = #tpu.core_type<tc>, window_params = [{transform_indices = @transform_0, window_bounds = array<i64: 2, 8, 32>}, {pipeline_mode = #tpu.pipeline_mode<synchronous>, transform_indices = @transform_1, window_bounds = array<i64: 32, 96>}, {pipeline_mode = #tpu.pipeline_mode<synchronous>, transform_indices = @transform_2, window_bounds = array<i64: 1, 96>}, {transform_indices = @transform_3, window_bounds = array<i64: 2, 8, 32>}]} {
    %c0 = arith.constant 0 : index
    %c0_0 = arith.constant 0 : index
    %c0_1 = arith.constant 0 : index
    %0 = vector.load %arg1[%c0, %c0_0, %c0_1] : memref<2x8x32xf32, #tpu.memory_space<vmem>>, vector<2x8x32xf32>
    %1 = vector.shape_cast %0 : vector<2x8x32xf32> to vector<16x32xf32>
    %c0_2 = arith.constant 0 : index
    %c0_3 = arith.constant 0 : index
    %2 = vector.load %arg2[%c0_2, %c0_3] : memref<32x96xf32, #tpu.memory_space<vmem>>, vector<32x96xf32>
    %cst = arith.constant dense<0.000000e+00> : vector<16x96xf32>
    %3 = tpu.matmul %1, %2, %cst {dimension_numbers = #tpu.dot_dimension_numbers<[1], [0], [0], [1], [0, 0, 1, 1], [], []>} : vector<16x32xf32>, vector<32x96xf32>, vector<16x96xf32> -> vector<16x96xf32>
    %c0_4 = arith.constant 0 : index
    %c0_5 = arith.constant 0 : index
    %4 = vector.load %arg3[%c0_4, %c0_5] : memref<1x96xf32, #tpu.memory_space<vmem>>, vector<1x96xf32>
    %5 = vector.broadcast %4 : vector<1x96xf32> to vector<16x96xf32>
    %6 = arith.addf %3, %5 : vector<16x96xf32>
    %7 = vector.extract_strided_slice %6 {offsets = [0, 0], sizes = [16, 32], strides = [1, 1]} : vector<16x96xf32> to vector<16x32xf32>
    %8 = vector.shape_cast %7 : vector<16x32xf32> to vector<2x8x32xf32>
    %9 = vector.extract_strided_slice %6 {offsets = [0, 32], sizes = [16, 32], strides = [1, 1]} : vector<16x96xf32> to vector<16x32xf32>
    %10 = vector.shape_cast %9 : vector<16x32xf32> to vector<2x8x32xf32>
    %11 = vector.extract_strided_slice %6 {offsets = [0, 64], sizes = [16, 32], strides = [1, 1]} : vector<16x96xf32> to vector<16x32xf32>
    %12 = vector.shape_cast %11 : vector<16x32xf32> to vector<2x8x32xf32>
    "tpu.trace_start"() <{level = 10 : i32, message = "btc,bsc->bts"}> : () -> ()
    %cst_6 = arith.constant dense<0.000000e+00> : vector<2x8x8xf32>
    %13 = tpu.matmul %8, %10, %cst_6 {dimension_numbers = #tpu.dot_dimension_numbers<[2], [2], [1], [1], [0, 0, 0, 1, 1, 1], [0], [0]>} : vector<2x8x32xf32>, vector<2x8x32xf32>, vector<2x8x8xf32> -> vector<2x8x8xf32>
    "tpu.trace_stop"() : () -> ()
    %14 = arith.negf %13 : vector<2x8x8xf32>
    %15 = math.exp %14 : vector<2x8x8xf32>
    %cst_7 = arith.constant 1.000000e+00 : f32
    %16 = vector.broadcast %cst_7 : f32 to vector<2x8x8xf32>
    %17 = arith.addf %16, %15 : vector<2x8x8xf32>
    %18 = arith.divf %16, %17 : vector<2x8x8xf32>
    "tpu.trace_start"() <{level = 10 : i32, message = "bts,bsc->btc"}> : () -> ()
    %cst_8 = arith.constant dense<0.000000e+00> : vector<2x8x32xf32>
    %19 = tpu.matmul %18, %12, %cst_8 {dimension_numbers = #tpu.dot_dimension_numbers<[2], [1], [1], [2], [0, 0, 0, 1, 1, 2], [0], [0]>} : vector<2x8x8xf32>, vector<2x8x32xf32>, vector<2x8x32xf32> -> vector<2x8x32xf32>
    "tpu.trace_stop"() : () -> ()
    %c0_9 = arith.constant 0 : index
    %c0_10 = arith.constant 0 : index
    %c0_11 = arith.constant 0 : index
    %20 = vector.load %arg4[%c0_9, %c0_10, %c0_11] : memref<2x8x32xf32, #tpu.memory_space<vmem>>, vector<2x8x32xf32>
    tpu.vector_store %arg4[%c0_9, %c0_10, %c0_11], %19 {strides = array<i32>} : memref<2x8x32xf32, #tpu.memory_space<vmem>>, vector<2x8x32xf32>,
    return
  }
  func.func @transform_0(%arg0: i32) -> (i32, i32, i32) {
    %c0_i32 = arith.constant 0 : i32
    %c0_i32_0 = arith.constant 0 : i32
    %c0_i32_1 = arith.constant 0 : i32
    return %arg0, %c0_i32, %c0_i32_0 : i32, i32, i32
  }
  func.func @transform_1(%arg0: i32) -> (i32, i32) {
    %c0_i32 = arith.constant 0 : i32
    %c0_i32_0 = arith.constant 0 : i32
    %c0_i32_1 = arith.constant 0 : i32
    return %c0_i32, %c0_i32_0 : i32, i32
  }
  func.func @transform_2(%arg0: i32) -> (i32, i32) {
    %c0_i32 = arith.constant 0 : i32
    %c0_i32_0 = arith.constant 0 : i32
    %c0_i32_1 = arith.constant 0 : i32
    return %c0_i32, %c0_i32_0 : i32, i32
  }
  func.func @transform_3(%arg0: i32) -> (i32, i32, i32) {
    %c0_i32 = arith.constant 0 : i32
    %c0_i32_0 = arith.constant 0 : i32
    %c0_i32_1 = arith.constant 0 : i32
    return %arg0, %c0_i32, %c0_i32_0 : i32, i32, i32
  }
}

</mosaic_0001>

<llo_original>
// kernel: tpu_custom_call.1
$region0: #{tpu_custom_call.1}
  #allocation0 [shape = 'u32[]', space=smem, size = 0x4, offset = 0x4, fixed_abs, tag = 'smem constant byte address 0x4 - core index']
  #allocation1 [shape = 'u32[144,128]{1,0:T(1,128)}', space=vmem, size = 0x12000, scoped, tag = 'internal scratch']
  %s0 = inlined_call_operand.hbm [shape: f32[2,8,32], index: 0, kind: input, shape index: {}]
  %s1 = inlined_call_operand.hbm [shape: f32[32,96], index: 1, kind: input, shape index: {}]
  %s2 = inlined_call_operand.vmem [shape: f32[1,96], index: 2, kind: input, shape index: {}]
  %s3 = inlined_call_operand.hbm [shape: f32[2,8,32], index: 3, kind: output, shape index: {}]
  %s4 = sld [smem:[#allocation0]]
  $region30: #{tpu_custom_call.1} parent=0
    _
  %s6 = ssub.s32 1, %s4
  %s7 = scalar_select 0, %s6, %s4
  $region1: #{tpu_custom_call.1} parent=0
    #allocation2 [shape = 'u8[8192]{0}', space=vmem, size = 0x2000, scoped, tag = 'input window, operand 0, single buffered']
    #allocation3 [shape = 's32[1]{0}', space=sflag, size = 0x4, scoped, tag = 'scoped memory for tpu_custom_call.1']
    #allocation4 [shape = 's32[1]{0}', space=sflag, size = 0x4, scoped, tag = 'scoped memory for tpu_custom_call.1']
    #allocation5 [shape = 'u8[16384]{0}', space=vmem, size = 0x4000, scoped, tag = 'input window, operand 1, single buffered']
    #allocation6 [shape = 's32[1]{0}', space=sflag, size = 0x4, scoped, tag = 'scoped memory for tpu_custom_call.1']
    #allocation7 [shape = 'u8[8192]{0}', space=vmem, size = 0x2000, scoped, tag = 'output window, operand 0, single buffered']
    %8 = vsyncpa [#allocation3], 0
    %9 = vsyncpa [#allocation6], 0
    %10 = vsyncpa [#allocation4], 0
    // Predicated region
    $region2: #{tpu_custom_call.1} parent=1 // pred_check
      _
    $region3: #{tpu_custom_call.1} parent=1 // pred_check_branch
      %12 = sbr.rel (0) target = $region5
    $region4: #{tpu_custom_call.1} parent=1 // pred_region
      %s14 = ssub.s32 256, 256
      %15 = vsyncadd [#allocation3], %s14
      %s16 = sshll.u32 [#allocation2], 4
      %s17 = int_to_ptr.vmem [resolvable:$true] %s16
      %22 = dma.hbm_to_vmem [thread:$0]  %s0, 256, %s17, [#allocation3], 128, 128, 8
    $region5: #{tpu_custom_call.1} parent=1 // pred_fallthru
      _
    // Predicated region
    $region6: #{tpu_custom_call.1} parent=1 // pred_check
      _
    $region7: #{tpu_custom_call.1} parent=1 // pred_check_branch
      %24 = sbr.rel (0) target = $region9
    $region8: #{tpu_custom_call.1} parent=1 // pred_region
      %s26 = ssub.s32 512, 512
      %27 = vsyncadd [#allocation6], %s26
      %s28 = sshll.u32 [#allocation5], 4
      %s29 = int_to_ptr.vmem [resolvable:$true] %s28
      %34 = dma.hbm_to_vmem [thread:$0]  %s1, 512, %s29, [#allocation6], 128, 128, 8
    $region9: #{tpu_custom_call.1} parent=1 // pred_fallthru
      _
    // Predicated region
    $region10: #{tpu_custom_call.1} parent=1 // pred_check
      _
    $region11: #{tpu_custom_call.1} parent=1 // pred_check_branch
      %36 = sbr.rel (0) target = $region13
    $region12: #{tpu_custom_call.1} parent=1 // pred_region
      _
    $region13: #{tpu_custom_call.1} parent=1 // pred_fallthru
      _
    // Predicated region
    $region14: #{tpu_custom_call.1} parent=1 // pred_check
      _
    $region15: #{tpu_custom_call.1} parent=1 // pred_check_branch
      %38 = sbr.rel (0) target = $region17
    $region16: #{tpu_custom_call.1} parent=1 // pred_region
      %39 = dma.done [#allocation3], 256
    $region17: #{tpu_custom_call.1} parent=1 // pred_fallthru
      _
    // Predicated region
    $region18: #{tpu_custom_call.1} parent=1 // pred_check
      _
    $region19: #{tpu_custom_call.1} parent=1 // pred_check_branch
      %41 = sbr.rel (0) target = $region21
    $region20: #{tpu_custom_call.1} parent=1 // pred_region
      %42 = dma.done [#allocation6], 512
    $region21: #{tpu_custom_call.1} parent=1 // pred_fallthru
      _
    %v43 = vld [vmem:[#allocation2] sm:$0xff]
    %v44 = vld [vmem:[#allocation2 + $0x8] sm:$0xff]
    %v45 = vld [vmem:[#allocation5] sm:$0xff]
    %v46 = vld [vmem:[#allocation5 + $0x8] sm:$0xff]
    %v47 = vld [vmem:[#allocation5 + $0x10] sm:$0xff]
    %v48 = vld [vmem:[#allocation5 + $0x18] sm:$0xff]
    %v49 = vld [vmem:[%s2] sm:$0x1]
    %v51 = vlaneseq
    %v52 = vshrl.u32 %v51, 7
    %v53 = vsub.s32 0, %v52
    %v54 = vrot.slane %v49, %v53
    %vm56 = vcmask 261120
    %v58 = vsel %vm56, %v43, 0
    %v61 = vsel %vm56, %v44, 0
    %63 = vmatprep.subr.mxu0 0.0
    %64 = vmatpush1.msra.mxu0 %v45
    %65 = vmatprep.subr.mxu0 0.0
    %66 = vmatpush1.msra.mxu0 %v46
    %67 = vmatprep.subr.mxu0 0.0
    %68 = vmatpush1.msra.mxu0 %v47
    %69 = vmatprep.subr.mxu0 0.0
    %70 = vmatpush1.msra.mxu0 %v48
    %71 = vmatprep.subr.mxu0 0.0
    %72 = vmatpush1.msra.mxu0 0.0
    %73 = vmatprep.subr.mxu0 0.0
    %74 = vmatpush1.msra.mxu0 0.0
    %75 = vmatprep.subr.mxu0 0.0
    %76 = vmatpush1.msra.mxu0 0.0
    %77 = vmatprep.subr.mxu0 0.0
    %78 = vmatpush1.msra.mxu0 0.0
    %79 = vmatprep.subr.mxu0 0.0
    %80 = vmatpush1.msra.mxu0 0.0
    %81 = vmatprep.subr.mxu0 0.0
    %82 = vmatpush1.msra.mxu0 0.0
    %83 = vmatprep.subr.mxu0 0.0
    %84 = vmatpush1.msra.mxu0 0.0
    %85 = vmatprep.subr.mxu0 0.0
    %86 = vmatpush1.msra.mxu0 0.0
    %87 = vmatprep.subr.mxu0 0.0
    %88 = vmatpush1.msra.mxu0 0.0
    %89 = vmatprep.subr.mxu0 0.0
    %90 = vmatpush1.msra.mxu0 0.0
    %91 = vmatprep.subr.mxu0 0.0
    %92 = vmatpush1.msra.mxu0 0.0
    %93 = vmatprep.subr.mxu0 0.0
    %94 = vmatpush1.msra.mxu0 0.0
    %95 = vmatprep.subr.mxu0 0.0
    %96 = vmatpush1.msra.mxu0 0.0
    %97 = vmatprep.subr.mxu0 0.0
    %98 = vmatpush1.msra.mxu0 0.0
    %99 = vmatprep.subr.mxu0 0.0
    %100 = vmatpush1.msra.mxu0 0.0
    %101 = vmatprep.subr.mxu0 0.0
    %102 = vmatpush1.msra.mxu0 0.0
    %103 = vmatprep.subr.mxu0 0.0
    %104 = vmatpush1.msra.mxu0 0.0
    %105 = vmatprep.subr.mxu0 0.0
    %106 = vmatpush1.msra.mxu0 0.0
    %107 = vmatprep.subr.mxu0 0.0
    %108 = vmatpush1.msra.mxu0 0.0
    %109 = vmatprep.subr.mxu0 0.0
    %110 = vmatpush1.msra.mxu0 0.0
    %111 = vmatprep.subr.mxu0 0.0
    %112 = vmatpush1.msra.mxu0 0.0
    %113 = vmatprep.subr.mxu0 0.0
    %114 = vmatpush1.msra.mxu0 0.0
    %115 = vmatprep.subr.mxu0 0.0
    %116 = vmatpush1.msra.mxu0 0.0
    %117 = vmatprep.subr.mxu0 0.0
    %118 = vmatpush1.msra.mxu0 0.0
    %119 = vmatprep.subr.mxu0 0.0
    %120 = vmatpush1.msra.mxu0 0.0
    %121 = vmatprep.subr.mxu0 0.0
    %122 = vmatpush1.msra.mxu0 0.0
    %123 = vmatprep.subr.mxu0 0.0
    %124 = vmatpush1.msra.mxu0 0.0
    %125 = vmatprep.subr.mxu0 0.0
    %126 = vmatpush1.msra.mxu0 0.0
    %127 = vmatprep.mubr.f32.mxu0 0.0
    %128 = vmatmul.mubr.f32.gmra.mrb[0].mxu0 %v58
    %v129 = vpop.f32.mrb[0].mxu0
    %v130 = vadd.f32 %v54, %v129
    %v131 = vpop.f32.mrb[0].mxu0
    %132 = vmatprep.mubr.f32.mxu0 0.0
    %133 = vmatmul.mubr.f32.gmra.mrb[0].mxu0 %v61
    %v134 = vpop.f32.mrb[0].mxu0
    %v135 = vadd.f32 %v54, %v134
    %v136 = vpop.f32.mrb[0].mxu0
    %137 = vdwg.mxu0
    %139 = vrot.lane.b32.xlu0 %v130, 96
    %v140 = vpop.permute.xlu0 %139
    %v141 = vsel %vm56, %v130, 0
    %v143 = vsel %vm56, %v140, 0
    %145 = vmatprep.subr.mxu0 0.0
    %146 = vmatpush1.xpose.msra.mxu0 %v143
    %147 = vmatprep.subr.mxu0 0.0
    %148 = vmatpush1.xpose.msra.mxu0 0.0
    %149 = vmatprep.subr.mxu0 0.0
    %150 = vmatpush1.xpose.msra.mxu0 0.0
    %151 = vmatprep.subr.mxu0 0.0
    %152 = vmatpush1.xpose.msra.mxu0 0.0
    %153 = vmatprep.subr.mxu0 0.0
    %154 = vmatpush1.xpose.msra.mxu0 0.0
    %155 = vmatprep.subr.mxu0 0.0
    %156 = vmatpush1.xpose.msra.mxu0 0.0
    %157 = vmatprep.subr.mxu0 0.0
    %158 = vmatpush1.xpose.msra.mxu0 0.0
    %159 = vmatprep.subr.mxu0 0.0
    %160 = vmatpush1.xpose.msra.mxu0 0.0
    %161 = vmatprep.subr.mxu0 0.0
    %162 = vmatpush1.xpose.msra.mxu0 0.0
    %163 = vmatprep.subr.mxu0 0.0
    %164 = vmatpush1.xpose.msra.mxu0 0.0
    %165 = vmatprep.subr.mxu0 0.0
    %166 = vmatpush1.xpose.msra.mxu0 0.0
    %167 = vmatprep.subr.mxu0 0.0
    %168 = vmatpush1.xpose.msra.mxu0 0.0
    %169 = vmatprep.subr.mxu0 0.0
    %170 = vmatpush1.xpose.msra.mxu0 0.0
    %171 = vmatprep.subr.mxu0 0.0
    %172 = vmatpush1.xpose.msra.mxu0 0.0
    %173 = vmatprep.subr.mxu0 0.0
    %174 = vmatpush1.xpose.msra.mxu0 0.0
    %175 = vmatprep.subr.mxu0 0.0
    %176 = vmatpush1.xpose.msra.mxu0 0.0
    %177 = vmatprep.subr.mxu0 0.0
    %178 = vmatpush1.xpose.msra.mxu0 0.0
    %179 = vmatprep.subr.mxu0 0.0
    %180 = vmatpush1.xpose.msra.mxu0 0.0
    %181 = vmatprep.subr.mxu0 0.0
    %182 = vmatpush1.xpose.msra.mxu0 0.0
    %183 = vmatprep.subr.mxu0 0.0
    %184 = vmatpush1.xpose.msra.mxu0 0.0
    %185 = vmatprep.subr.mxu0 0.0
    %186 = vmatpush1.xpose.msra.mxu0 0.0
    %187 = vmatprep.subr.mxu0 0.0
    %188 = vmatpush1.xpose.msra.mxu0 0.0
    %189 = vmatprep.subr.mxu0 0.0
    %190 = vmatpush1.xpose.msra.mxu0 0.0
    %191 = vmatprep.subr.mxu0 0.0
    %192 = vmatpush1.xpose.msra.mxu0 0.0
    %193 = vmatprep.subr.mxu0 0.0
    %194 = vmatpush1.xpose.msra.mxu0 0.0
    %195 = vmatprep.subr.mxu0 0.0
    %196 = vmatpush1.xpose.msra.mxu0 0.0
    %197 = vmatprep.subr.mxu0 0.0
    %198 = vmatpush1.xpose.msra.mxu0 0.0
    %199 = vmatprep.subr.mxu0 0.0
    %200 = vmatpush1.xpose.msra.mxu0 0.0
    %201 = vmatprep.subr.mxu0 0.0
    %202 = vmatpush1.xpose.msra.mxu0 0.0
    %203 = vmatprep.subr.mxu0 0.0
    %204 = vmatpush1.xpose.msra.mxu0 0.0
    %205 = vmatprep.subr.mxu0 0.0
    %206 = vmatpush1.xpose.msra.mxu0 0.0
    %207 = vmatprep.subr.mxu0 0.0
    %208 = vmatpush1.xpose.msra.mxu0 0.0
    %209 = vmatprep.mubr.f32.mxu0 0.0
    %210 = vmatmul.mubr.f32.gmra.mrb[0].mxu0 %v141
    %v211 = vpop.f32.mrb[0].mxu0
    %v212 = vadd.f32 0.0, %v211
    %v213 = vpop.f32.mrb[0].mxu0
    %214 = vdwg.mxu0
    %216 = vrot.lane.b32.xlu0 %v135, 96
    %v217 = vpop.permute.xlu0 %216
    %v218 = vsel %vm56, %v135, 0
    %v220 = vsel %vm56, %v217, 0
    %222 = vmatprep.subr.mxu0 0.0
    %223 = vmatpush1.xpose.msra.mxu0 %v220
    %224 = vmatprep.subr.mxu0 0.0
    %225 = vmatpush1.xpose.msra.mxu0 0.0
    %226 = vmatprep.subr.mxu0 0.0
    %227 = vmatpush1.xpose.msra.mxu0 0.0
    %228 = vmatprep.subr.mxu0 0.0
    %229 = vmatpush1.xpose.msra.mxu0 0.0
    %230 = vmatprep.subr.mxu0 0.0
    %231 = vmatpush1.xpose.msra.mxu0 0.0
    %232 = vmatprep.subr.mxu0 0.0
    %233 = vmatpush1.xpose.msra.mxu0 0.0
    %234 = vmatprep.subr.mxu0 0.0
    %235 = vmatpush1.xpose.msra.mxu0 0.0
    %236 = vmatprep.subr.mxu0 0.0
    %237 = vmatpush1.xpose.msra.mxu0 0.0
    %238 = vmatprep.subr.mxu0 0.0
    %239 = vmatpush1.xpose.msra.mxu0 0.0
    %240 = vmatprep.subr.mxu0 0.0
    %241 = vmatpush1.xpose.msra.mxu0 0.0
    %242 = vmatprep.subr.mxu0 0.0
    %243 = vmatpush1.xpose.msra.mxu0 0.0
    %244 = vmatprep.subr.mxu0 0.0
    %245 = vmatpush1.xpose.msra.mxu0 0.0
    %246 = vmatprep.subr.mxu0 0.0
    %247 = vmatpush1.xpose.msra.mxu0 0.0
    %248 = vmatprep.subr.mxu0 0.0
    %249 = vmatpush1.xpose.msra.mxu0 0.0
    %250 = vmatprep.subr.mxu0 0.0
    %251 = vmatpush1.xpose.msra.mxu0 0.0
    %252 = vmatprep.subr.mxu0 0.0
    %253 = vmatpush1.xpose.msra.mxu0 0.0
    %254 = vmatprep.subr.mxu0 0.0
    %255 = vmatpush1.xpose.msra.mxu0 0.0
    %256 = vmatprep.subr.mxu0 0.0
    %257 = vmatpush1.xpose.msra.mxu0 0.0
    %258 = vmatprep.subr.mxu0 0.0
    %259 = vmatpush1.xpose.msra.mxu0 0.0
    %260 = vmatprep.subr.mxu0 0.0
    %261 = vmatpush1.xpose.msra.mxu0 0.0
    %262 = vmatprep.subr.mxu0 0.0
    %263 = vmatpush1.xpose.msra.mxu0 0.0
    %264 = vmatprep.subr.mxu0 0.0
    %265 = vmatpush1.xpose.msra.mxu0 0.0
    %266 = vmatprep.subr.mxu0 0.0
    %267 = vmatpush1.xpose.msra.mxu0 0.0
    %268 = vmatprep.subr.mxu0 0.0
    %269 = vmatpush1.xpose.msra.mxu0 0.0
    %270 = vmatprep.subr.mxu0 0.0
    %271 = vmatpush1.xpose.msra.mxu0 0.0
    %272 = vmatprep.subr.mxu0 0.0
    %273 = vmatpush1.xpose.msra.mxu0 0.0
    %274 = vmatprep.subr.mxu0 0.0
    %275 = vmatpush1.xpose.msra.mxu0 0.0
    %276 = vmatprep.subr.mxu0 0.0
    %277 = vmatpush1.xpose.msra.mxu0 0.0
    %278 = vmatprep.subr.mxu0 0.0
    %279 = vmatpush1.xpose.msra.mxu0 0.0
    %280 = vmatprep.subr.mxu0 0.0
    %281 = vmatpush1.xpose.msra.mxu0 0.0
    %282 = vmatprep.subr.mxu0 0.0
    %283 = vmatpush1.xpose.msra.mxu0 0.0
    %284 = vmatprep.subr.mxu0 0.0
    %285 = vmatpush1.xpose.msra.mxu0 0.0
    %286 = vmatprep.mubr.f32.mxu0 0.0
    %287 = vmatmul.mubr.f32.gmra.mrb[0].mxu0 %v218
    %v288 = vpop.f32.mrb[0].mxu0
    %v289 = vadd.f32 0.0, %v288
    %v290 = vpop.f32.mrb[0].mxu0
    %291 = vdwg.mxu0
    %v292 = vxor.u32 %v212, 2147483648
    %v293 = vxor.u32 %v289, 2147483648
    %v294 = vmul.f32 %v292, 1.442695
    %v295 = vpow.pop %v294
    %v296 = vmul.f32 %v293, 1.442695
    %v297 = vpow.pop %v296
    %v298 = vadd.f32 %v295, 1.0
    %v299 = vadd.f32 %v297, 1.0
    %v300 = vrcp.pop %v298
    %v301 = vmul.f32 1.0, %v300
    %v302 = vrcp.pop %v299
    %v303 = vmul.f32 1.0, %v302
    %304 = vrot.lane.b32.xlu0 %v130, 64
    %v305 = vpop.permute.xlu0 %304
    %vm307 = vcmask 64512
    %v309 = vsel %vm307, %v301, 0
    %311 = vmatprep.subr.mxu0 0.0
    %312 = vmatpush1.msra.mxu0 %v305
    %313 = vmatprep.subr.mxu0 0.0
    %314 = vmatpush1.msra.mxu0 0.0
    %315 = vmatprep.subr.mxu0 0.0
    %316 = vmatpush1.msra.mxu0 0.0
    %317 = vmatprep.subr.mxu0 0.0
    %318 = vmatpush1.msra.mxu0 0.0
    %319 = vmatprep.subr.mxu0 0.0
    %320 = vmatpush1.msra.mxu0 0.0
    %321 = vmatprep.subr.mxu0 0.0
    %322 = vmatpush1.msra.mxu0 0.0
    %323 = vmatprep.subr.mxu0 0.0
    %324 = vmatpush1.msra.mxu0 0.0
    %325 = vmatprep.subr.mxu0 0.0
    %326 = vmatpush1.msra.mxu0 0.0
    %327 = vmatprep.subr.mxu0 0.0
    %328 = vmatpush1.msra.mxu0 0.0
    %329 = vmatprep.subr.mxu0 0.0
    %330 = vmatpush1.msra.mxu0 0.0
    %331 = vmatprep.subr.mxu0 0.0
    %332 = vmatpush1.msra.mxu0 0.0
    %333 = vmatprep.subr.mxu0 0.0
    %334 = vmatpush1.msra.mxu0 0.0
    %335 = vmatprep.subr.mxu0 0.0
    %336 = vmatpush1.msra.mxu0 0.0
    %337 = vmatprep.subr.mxu0 0.0
    %338 = vmatpush1.msra.mxu0 0.0
    %339 = vmatprep.subr.mxu0 0.0
    %340 = vmatpush1.msra.mxu0 0.0
    %341 = vmatprep.subr.mxu0 0.0
    %342 = vmatpush1.msra.mxu0 0.0
    %343 = vmatprep.subr.mxu0 0.0
    %344 = vmatpush1.msra.mxu0 0.0
    %345 = vmatprep.subr.mxu0 0.0
    %346 = vmatpush1.msra.mxu0 0.0
    %347 = vmatprep.subr.mxu0 0.0
    %348 = vmatpush1.msra.mxu0 0.0
    %349 = vmatprep.subr.mxu0 0.0
    %350 = vmatpush1.msra.mxu0 0.0
    %351 = vmatprep.subr.mxu0 0.0
    %352 = vmatpush1.msra.mxu0 0.0
    %353 = vmatprep.subr.mxu0 0.0
    %354 = vmatpush1.msra.mxu0 0.0
    %355 = vmatprep.subr.mxu0 0.0
    %356 = vmatpush1.msra.mxu0 0.0
    %357 = vmatprep.subr.mxu0 0.0
    %358 = vmatpush1.msra.mxu0 0.0
    %359 = vmatprep.subr.mxu0 0.0
    %360 = vmatpush1.msra.mxu0 0.0
    %361 = vmatprep.subr.mxu0 0.0
    %362 = vmatpush1.msra.mxu0 0.0
    %363 = vmatprep.subr.mxu0 0.0
    %364 = vmatpush1.msra.mxu0 0.0
    %365 = vmatprep.subr.mxu0 0.0
    %366 = vmatpush1.msra.mxu0 0.0
    %367 = vmatprep.subr.mxu0 0.0
    %368 = vmatpush1.msra.mxu0 0.0
    %369 = vmatprep.subr.mxu0 0.0
    %370 = vmatpush1.msra.mxu0 0.0
    %371 = vmatprep.subr.mxu0 0.0
    %372 = vmatpush1.msra.mxu0 0.0
    %373 = vmatprep.subr.mxu0 0.0
    %374 = vmatpush1.msra.mxu0 0.0
    %375 = vmatprep.mubr.f32.mxu0 0.0
    %376 = vmatmul.mubr.f32.gmra.mrb[0].mxu0 %v309
    %v377 = vpop.f32.mrb[0].mxu0
    %v378 = vadd.f32 0.0, %v377
    %v379 = vpop.f32.mrb[0].mxu0
    %380 = vdwg.mxu0
    %381 = vrot.lane.b32.xlu0 %v135, 64
    %v382 = vpop.permute.xlu0 %381
    %v385 = vsel %vm307, %v303, 0
    %387 = vmatprep.subr.mxu0 0.0
    %388 = vmatpush1.msra.mxu0 %v382
    %389 = vmatprep.subr.mxu0 0.0
    %390 = vmatpush1.msra.mxu0 0.0
    %391 = vmatprep.subr.mxu0 0.0
    %392 = vmatpush1.msra.mxu0 0.0
    %393 = vmatprep.subr.mxu0 0.0
    %394 = vmatpush1.msra.mxu0 0.0
    %395 = vmatprep.subr.mxu0 0.0
    %396 = vmatpush1.msra.mxu0 0.0
    %397 = vmatprep.subr.mxu0 0.0
    %398 = vmatpush1.msra.mxu0 0.0
    %399 = vmatprep.subr.mxu0 0.0
    %400 = vmatpush1.msra.mxu0 0.0
    %401 = vmatprep.subr.mxu0 0.0
    %402 = vmatpush1.msra.mxu0 0.0
    %403 = vmatprep.subr.mxu0 0.0
    %404 = vmatpush1.msra.mxu0 0.0
    %405 = vmatprep.subr.mxu0 0.0
    %406 = vmatpush1.msra.mxu0 0.0
    %407 = vmatprep.subr.mxu0 0.0
    %408 = vmatpush1.msra.mxu0 0.0
    %409 = vmatprep.subr.mxu0 0.0
    %410 = vmatpush1.msra.mxu0 0.0
    %411 = vmatprep.subr.mxu0 0.0
    %412 = vmatpush1.msra.mxu0 0.0
    %413 = vmatprep.subr.mxu0 0.0
    %414 = vmatpush1.msra.mxu0 0.0
    %415 = vmatprep.subr.mxu0 0.0
    %416 = vmatpush1.msra.mxu0 0.0
    %417 = vmatprep.subr.mxu0 0.0
    %418 = vmatpush1.msra.mxu0 0.0
    %419 = vmatprep.subr.mxu0 0.0
    %420 = vmatpush1.msra.mxu0 0.0
    %421 = vmatprep.subr.mxu0 0.0
    %422 = vmatpush1.msra.mxu0 0.0
    %423 = vmatprep.subr.mxu0 0.0
    %424 = vmatpush1.msra.mxu0 0.0
    %425 = vmatprep.subr.mxu0 0.0
    %426 = vmatpush1.msra.mxu0 0.0
    %427 = vmatprep.subr.mxu0 0.0
    %428 = vmatpush1.msra.mxu0 0.0
    %429 = vmatprep.subr.mxu0 0.0
    %430 = vmatpush1.msra.mxu0 0.0
    %431 = vmatprep.subr.mxu0 0.0
    %432 = vmatpush1.msra.mxu0 0.0
    %433 = vmatprep.subr.mxu0 0.0
    %434 = vmatpush1.msra.mxu0 0.0
    %435 = vmatprep.subr.mxu0 0.0
    %436 = vmatpush1.msra.mxu0 0.0
    %437 = vmatprep.subr.mxu0 0.0
    %438 = vmatpush1.msra.mxu0 0.0
    %439 = vmatprep.subr.mxu0 0.0
    %440 = vmatpush1.msra.mxu0 0.0
    %441 = vmatprep.subr.mxu0 0.0
    %442 = vmatpush1.msra.mxu0 0.0
    %443 = vmatprep.subr.mxu0 0.0
    %444 = vmatpush1.msra.mxu0 0.0
    %445 = vmatprep.subr.mxu0 0.0
    %446 = vmatpush1.msra.mxu0 0.0
    %447 = vmatprep.subr.mxu0 0.0
    %448 = vmatpush1.msra.mxu0 0.0
    %449 = vmatprep.subr.mxu0 0.0
    %450 = vmatpush1.msra.mxu0 0.0
    %451 = vmatprep.mubr.f32.mxu0 0.0
    %452 = vmatmul.mubr.f32.gmra.mrb[0].mxu0 %v385
    %v453 = vpop.f32.mrb[0].mxu0
    %v454 = vadd.f32 0.0, %v453
    %v455 = vpop.f32.mrb[0].mxu0
    %456 = vdwg.mxu0
    %457 = vst.msk [vmem:[#allocation7] sm:$0xff] %vm56, %v378
    %458 = vst.msk [vmem:[#allocation7 + $0x8] sm:$0xff] %vm56, %v454
    // Predicated region
    $region22: #{tpu_custom_call.1} parent=1 // pred_check
      _
    $region23: #{tpu_custom_call.1} parent=1 // pred_check_branch
      %460 = sbr.rel (0) target = $region25
    $region24: #{tpu_custom_call.1} parent=1 // pred_region
      %s462 = ssub.s32 256, 256
      %463 = vsyncadd [#allocation4], %s462
      %s464 = sshll.u32 [#allocation7], 4
      %s465 = int_to_ptr.vmem [resolvable:$true] %s464
      %470 = dma.vmem_to_hbm [thread:$0]  %s465, 256, %s3, [#allocation4], 128, 128, 8
    $region25: #{tpu_custom_call.1} parent=1 // pred_fallthru
      _
    // Predicated region
    $region26: #{tpu_custom_call.1} parent=1 // pred_check
      _
    $region27: #{tpu_custom_call.1} parent=1 // pred_check_branch
      %472 = sbr.rel (0) target = $region29
    $region28: #{tpu_custom_call.1} parent=1 // pred_region
      %473 = dma.done [#allocation4], 256
    $region29: #{tpu_custom_call.1} parent=1 // pred_fallthru
      _
    %474 = vsyncpa [#allocation3], 1
    %475 = vsyncpa [#allocation6], 1
    %476 = vsyncpa [#allocation4], 1

</llo_original>
